<compile_context>
chip_gen: v5e
topology: v5e:2x2
jax: 0.10.0
libtpu: 0.0.40
codegen_flags: <defaults>
</compile_context>

<pallas_src>
import functools

import numpy as np
import jax
import jax.numpy as jnp
from jax.experimental import pallas as pl
from jax.experimental.pallas import tpu as pltpu


# ----------------------------------------------------------------------------
# Index-only matrices reproducing PyTorch semantics exactly.
# ----------------------------------------------------------------------------
def _adaptive_pool_matrix(in_size, out_size):
    """P[i, k] = 1/len(bin_i) if k in bin_i (PyTorch adaptive_avg_pool bins)."""
    P = np.zeros((out_size, in_size), dtype=np.float32)
    for i in range(out_size):
        start = (i * in_size) // out_size
        end = -((-(i + 1) * in_size) // out_size)  # ceil((i+1)*in/out)
        P[i, start:end] = 1.0 / (end - start)
    return P


def _bilinear_matrix_align_corners(out_size, in_size):
    """U[j, i] = weight; F.interpolate(..., 'bilinear', align_corners=True)."""
    U = np.zeros((out_size, in_size), dtype=np.float32)
    if in_size == 1:
        U[:, 0] = 1.0
        return U
    for j in range(out_size):
        src = j * (in_size - 1) / (out_size - 1) if out_size > 1 else 0.0
        i0 = min(int(np.floor(src)), in_size - 2)
        frac = src - i0
        U[j, i0] += 1.0 - frac
        U[j, i0 + 1] += frac
    return U


# ----------------------------------------------------------------------------
# Pallas kernel: single invocation, whole problem as three MXU matmuls.
#   x_aug  : (N*Cin + 1, H*W)   last row is all-ones (bias path)
#   p2t    : (H*W, s*s)         adaptive-pool matrix (transposed Kron)
#   w_aug  : (N*Cout, N*Cin+1)  block-diag BN-folded conv weight | bias column
#   u2t    : (s*s, H*W)         align_corners bilinear matrix (transposed Kron)
#   out    : (N*Cout, H*W)      lane-dense (256-wide) store
# ----------------------------------------------------------------------------
def pool_align_kernel(x_ref, p2t_ref, w_ref, u2t_ref, o_ref):
    # adaptive average pool (exact PyTorch bins); ones-row stays exactly ones
    pooled = jnp.dot(x_ref[...], p2t_ref[...],
                     preferred_element_type=jnp.float32)          # (N*Cin+1, s*s)
    # 1x1 conv with BN scale + BN bias folded in, then ReLU
    z = jnp.maximum(
        jnp.dot(w_ref[...], pooled, preferred_element_type=jnp.float32),
        0.0)                                                       # (N*Cout, s*s)
    # bilinear upsample (align_corners=True) -> lane-dense output store
    o_ref[...] = jnp.dot(z, u2t_ref[...],
                         preferred_element_type=jnp.float32)       # (N*Cout, H*W)


@functools.partial(jax.jit, static_argnames=("scale", "eps"))
def pool_and_align(x_nchw, conv_w, bn_gamma, bn_beta, bn_mean, bn_var,
                   scale, eps=1e-5):
    """Forward of PoolAndAlign. x_nchw: (N, Cin, H, W) float32. Returns NCHW."""
    N, Cin, H, W = x_nchw.shape
    Cout = conv_w.shape[0]
    s = scale
    HW, SS = H * W, s * s
    NCin1 = N * Cin + 1
    NCout = N * Cout

    # NCHW -> (N*Cin, H*W) is a pure reshape; append the ones-row for the bias.
    x_flat = x_nchw.reshape(N * Cin, HW)
    x_aug = jnp.concatenate(
        [x_flat, jnp.ones((1, HW), dtype=jnp.float32)], axis=0)     # (N*Cin+1, HW)

    # TODO(synk): BatchNorm uses inference-mode running stats; training-mode
    # batch statistics are not modeled.
    inv_std = 1.0 / jnp.sqrt(bn_var + eps)
    bn_scale = bn_gamma * inv_std                                    # (Cout,)
    w_folded = conv_w.reshape(Cout, Cin) * bn_scale[:, None]         # (Cout, Cin)
    bias = bn_beta - bn_mean * bn_scale                              # (Cout,)

    # Block-diagonal over the batch (batch folded into sublanes) + bias column.
    w_bd = jnp.kron(jnp.eye(N, dtype=jnp.float32), w_folded)        # (N*Cout, N*Cin)
    w_aug = jnp.concatenate(
        [w_bd, jnp.tile(bias, N)[:, None]], axis=1)                  # (N*Cout, N*Cin+1)

    # Constant pool / upsample matrices (compile-time constants under jit).
    ph = _adaptive_pool_matrix(H, s)
    pw = _adaptive_pool_matrix(W, s)
    uh = _bilinear_matrix_align_corners(H, s)
    uw = _bilinear_matrix_align_corners(W, s)
    p2t = jnp.asarray(np.kron(ph, pw).T)                             # (H*W, s*s)
    u2t = jnp.asarray(np.kron(uh, uw).T)                             # (s*s, H*W)

    flops = 2 * (NCin1 * HW * SS + NCout * NCin1 * SS + NCout * SS * HW)
    bytes_accessed = 4 * (NCin1 * HW + HW * SS + NCout * NCin1
                          + SS * HW + NCout * HW)
    cost = pl.CostEstimate(flops=flops, transcendentals=0,
                           bytes_accessed=bytes_accessed)

    out = pl.pallas_call(
        pool_align_kernel,
        out_shape=jax.ShapeDtypeStruct((NCout, HW), jnp.float32),
        # No grid: single invocation, whole (tiny) arrays resident in VMEM.
        compiler_params=pltpu.CompilerParams(
            vmem_limit_bytes=4 * 1024 * 1024),
        cost_estimate=cost,
    )(x_aug, p2t, w_aug, u2t)

    # (N*Cout, H*W) -> NCHW: pure reshape, no data movement.
    return out.reshape(N, Cout, H, W)


# ----------------------------------------------------------------------------
# Pure-JAX reference (independent path) for a sanity check.
# ----------------------------------------------------------------------------
def ref_forward(x_nchw, conv_w, bn_gamma, bn_beta, bn_mean, bn_var, scale, eps=1e-5):
    N, Cin, H, W = x_nchw.shape
    Cout = conv_w.shape[0]
    s = scale
    # H, W divisible by scale in the test -> adaptive pool == uniform mean pool
    xp = x_nchw.reshape(N, Cin, s, H // s, s, W // s).mean(axis=(3, 5))   # (N,Cin,s,s)
    z = jnp.einsum('ncij,dc->ndij', xp, conv_w.reshape(Cout, Cin))
    z = (z - bn_mean[None, :, None, None]) / jnp.sqrt(bn_var + eps)[None, :, None, None]
    z = z * bn_gamma[None, :, None, None] + bn_beta[None, :, None, None]
    z = jnp.maximum(z, 0.0)
    uh = jnp.asarray(_bilinear_matrix_align_corners(H, s))
    uw = jnp.asarray(_bilinear_matrix_align_corners(W, s))
    return jnp.einsum('Hi,ndij,Wj->ndHW', uh, z, uw)


if __name__ == "__main__":
    key = jax.random.PRNGKey(0)
    k_x, k_w, k_g, k_b, k_m, k_v = jax.random.split(key, 6)

    N, Cin, Cout, H, W, scale = 2, 4, 8, 16, 16, 4

    x = jax.random.normal(k_x, (N, Cin, H, W), dtype=jnp.float32)
    conv_w = jax.random.normal(k_w, (Cout, Cin, 1, 1), dtype=jnp.float32) * 0.2
    bn_gamma = 0.5 + jax.random.uniform(k_g, (Cout,), dtype=jnp.float32)
    bn_beta = jax.random.normal(k_b, (Cout,), dtype=jnp.float32) * 0.1
    bn_mean = jax.random.normal(k_m, (Cout,), dtype=jnp.float32) * 0.1
    bn_var = 0.5 + jax.random.uniform(k_v, (Cout,), dtype=jnp.float32)

    out = pool_and_align(x, conv_w, bn_gamma, bn_beta, bn_mean, bn_var,
                         scale=scale)
    out = jax.block_until_ready(out)

    ref = jax.block_until_ready(
        ref_forward(x, conv_w, bn_gamma, bn_beta, bn_mean, bn_var, scale))

    assert out.shape == (N, Cout, H, W)
    assert jnp.allclose(out, ref, atol=1e-4, rtol=1e-4), \
        f"max abs err {jnp.max(jnp.abs(out - ref))}"
    print("KERNEL_OK")
</pallas_src>

<mosaic_0001>
module attributes {stable_mosaic.version = 11 : i64} {
  func.func @pool_align_kernel(%arg0: memref<9x256xf32, #tpu.memory_space<vmem>>, %arg1: memref<256x16xf32, #tpu.memory_space<vmem>>, %arg2: memref<16x9xf32, #tpu.memory_space<vmem>>, %arg3: memref<16x256xf32, #tpu.memory_space<vmem>>, %arg4: memref<16x256xf32, #tpu.memory_space<vmem>>) attributes {dimension_semantics = [], scalar_prefetch = 0 : i64, scratch_operands = 0 : i64, tpu.core_type = #tpu.core_type<tc>} {
    %c0 = arith.constant 0 : index
    %c0_0 = arith.constant 0 : index
    %0 = vector.load %arg0[%c0, %c0_0] : memref<9x256xf32, #tpu.memory_space<vmem>>, vector<9x256xf32>
    %c0_1 = arith.constant 0 : index
    %c0_2 = arith.constant 0 : index
    %1 = vector.load %arg1[%c0_1, %c0_2] : memref<256x16xf32, #tpu.memory_space<vmem>>, vector<256x16xf32>
    %cst = arith.constant dense<0.000000e+00> : vector<9x16xf32>
    %2 = tpu.matmul %0, %1, %cst {dimension_numbers = #tpu.dot_dimension_numbers<[1], [0], [0], [1], [0, 0, 1, 1], [], []>} : vector<9x256xf32>, vector<256x16xf32>, vector<9x16xf32> -> vector<9x16xf32>
    %c0_3 = arith.constant 0 : index
    %c0_4 = arith.constant 0 : index
    %3 = vector.load %arg2[%c0_3, %c0_4] : memref<16x9xf32, #tpu.memory_space<vmem>>, vector<16x9xf32>
    %cst_5 = arith.constant dense<0.000000e+00> : vector<16x16xf32>
    %4 = tpu.matmul %3, %2, %cst_5 {dimension_numbers = #tpu.dot_dimension_numbers<[1], [0], [0], [1], [0, 0, 1, 1], [], []>} : vector<16x9xf32>, vector<9x16xf32>, vector<16x16xf32> -> vector<16x16xf32>
    %cst_6 = arith.constant 0.000000e+00 : f32
    %5 = vector.broadcast %cst_6 : f32 to vector<16x16xf32>
    %6 = arith.maximumf %4, %5 : vector<16x16xf32>
    %c0_7 = arith.constant 0 : index
    %c0_8 = arith.constant 0 : index
    %7 = vector.load %arg3[%c0_7, %c0_8] : memref<16x256xf32, #tpu.memory_space<vmem>>, vector<16x256xf32>
    %cst_9 = arith.constant dense<0.000000e+00> : vector<16x256xf32>
    %8 = tpu.matmul %6, %7, %cst_9 {dimension_numbers = #tpu.dot_dimension_numbers<[1], [0], [0], [1], [0, 0, 1, 1], [], []>} : vector<16x16xf32>, vector<16x256xf32>, vector<16x256xf32> -> vector<16x256xf32>
    %c0_10 = arith.constant 0 : index
    %c0_11 = arith.constant 0 : index
    %9 = vector.load %arg4[%c0_10, %c0_11] : memref<16x256xf32, #tpu.memory_space<vmem>>, vector<16x256xf32>
    tpu.vector_store %arg4[%c0_10, %c0_11], %8 {strides = array<i32>} : memref<16x256xf32, #tpu.memory_space<vmem>>, vector<16x256xf32>,
    return
  }
}

</mosaic_0001>

<llo_original>
// kernel: tile.8
$region0: #{tile.8}
  #allocation0 [shape = 's32[1]{0}', space=sflag, size = 0x4, scoped, tag = 'scoped memory for tile.8']
  %s0 = inlined_call_operand.vmem [shape: f32[8], index: 0, kind: input, shape index: {}]
  %s1 = inlined_call_operand.vmem [shape: f32[2,8], index: 1, kind: output, shape index: {}]
  // Predicated region
  $region2: #{tile.8} parent=0 // pred_check
    _
  $region3: #{tile.8} parent=0 // pred_check_branch
    %3 = sbr.rel (0) target = $region5
  $region4: #{tile.8} parent=0 // pred_region
    _
  $region5: #{tile.8} parent=0 // pred_fallthru
    _
  %v4 = vld [vmem:[%s0] ss:$0 sm:$0xff]
  %5 = vst [vmem:[%s1] sm:$0x3] %v4

// kernel: tile.0
$region0: #{tile.0}
  %s0 = inlined_call_operand.vmem [shape: f32[2,8], index: 0, kind: input, shape index: {}]
  %s1 = inlined_call_operand.vmem [shape: f32[16,1], index: 1, kind: output, shape index: {}]
  $region1: #{tile.0} parent=0
    #allocation0 [shape = 'u8[4096]{0}', space=vmem, size = 0x1000, scoped, tag = 'scoped mem for input reshape']
    %s3 = ssub.s32 4, 1
    %v4 = vld [vmem:[%s0] sm:%s3]
    %5 = vst [vmem:[#allocation0] sm:%s3] %v4
    %v6 = vld [vmem:[#allocation0] sm:$0x3]
    %vm7 = vcmask 7168
    %8 = vst.msk [vmem:[%s1] ss:$8 sm:$0x3] %vm7, %v6
    %v9 = vld [vmem:[#allocation0] sm:$0x3]
    %10 = vrot.lane.b32.xlu0 %v9, 127
    %v11 = vpop.permute.xlu0 %10
    %vm12 = vcmask 7168
    %s13 = scalar_lea.vmem %s1, 1
    %14 = vst.msk [vmem:[%s13] ss:$8 sm:$0x3] %vm12, %v11
    %v15 = vld [vmem:[#allocation0] sm:$0x3]
    %16 = vrot.lane.b32.xlu0 %v15, 126
    %v17 = vpop.permute.xlu0 %16
    %vm18 = vcmask 7168
    %s19 = scalar_lea.vmem %s1, 2
    %20 = vst.msk [vmem:[%s19] ss:$8 sm:$0x3] %vm18, %v17
    %v21 = vld [vmem:[#allocation0] sm:$0x3]
    %22 = vrot.lane.b32.xlu0 %v21, 125
    %v23 = vpop.permute.xlu0 %22
    %vm24 = vcmask 7168
    %s25 = scalar_lea.vmem %s1, 3
    %26 = vst.msk [vmem:[%s25] ss:$8 sm:$0x3] %vm24, %v23
    %v27 = vld [vmem:[#allocation0] sm:$0x3]
    %28 = vrot.lane.b32.xlu0 %v27, 124
    %v29 = vpop.permute.xlu0 %28
    %vm30 = vcmask 7168
    %s31 = scalar_lea.vmem %s1, 4
    %32 = vst.msk [vmem:[%s31] ss:$8 sm:$0x3] %vm30, %v29
    %v33 = vld [vmem:[#allocation0] sm:$0x3]
    %34 = vrot.lane.b32.xlu0 %v33, 123
    %v35 = vpop.permute.xlu0 %34
    %vm36 = vcmask 7168
    %s37 = scalar_lea.vmem %s1, 5
    %38 = vst.msk [vmem:[%s37] ss:$8 sm:$0x3] %vm36, %v35
    %v39 = vld [vmem:[#allocation0] sm:$0x3]
    %40 = vrot.lane.b32.xlu0 %v39, 122
    %v41 = vpop.permute.xlu0 %40
    %vm42 = vcmask 7168
    %s43 = scalar_lea.vmem %s1, 6
    %44 = vst.msk [vmem:[%s43] ss:$8 sm:$0x3] %vm42, %v41
    %v45 = vld [vmem:[#allocation0] sm:$0x3]
    %46 = vrot.lane.b32.xlu0 %v45, 121
    %v47 = vpop.permute.xlu0 %46
    %vm48 = vcmask 7168
    %s49 = scalar_lea.vmem %s1, 7
    %50 = vst.msk [vmem:[%s49] ss:$8 sm:$0x3] %vm48, %v47

// kernel: pool_and_align.1
$region0: #{pool_and_align.1}
  #allocation0 [shape = 'u32[]', space=smem, size = 0x4, offset = 0x4, fixed_abs, tag = 'smem constant byte address 0x4 - core index']
  #allocation1 [shape = 'u32[72,128]{1,0:T(1,128)}', space=vmem, size = 0x9000, scoped, tag = 'internal scratch']
  %s0 = inlined_call_operand.vmem [shape: f32[9,256], index: 0, kind: input, shape index: {}]
  %s1 = inlined_call_operand.vmem [shape: f32[256,16], index: 1, kind: input, shape index: {}]
  %s2 = inlined_call_operand.vmem [shape: f32[16,9], index: 2, kind: input, shape index: {}]
  %s3 = inlined_call_operand.vmem [shape: f32[16,256], index: 3, kind: input, shape index: {}]
  %s4 = inlined_call_operand.vmem [shape: f32[16,256], index: 4, kind: output, shape index: {}]
  %s5 = sld [smem:[#allocation0]]
  $region26: #{pool_and_align.1} parent=0
    _
  %s7 = ssub.s32 1, %s5
  %s8 = scalar_select 0, %s7, %s5
  // Predicated region
  $region2: #{pool_and_align.1} parent=0 // pred_check
    _
  $region3: #{pool_and_align.1} parent=0 // pred_check_branch
    %10 = sbr.rel (0) target = $region5
  $region4: #{pool_and_align.1} parent=0 // pred_region
    _
  $region5: #{pool_and_align.1} parent=0 // pred_fallthru
    _
  // Predicated region
  $region6: #{pool_and_align.1} parent=0 // pred_check
    _
  $region7: #{pool_and_align.1} parent=0 // pred_check_branch
    %12 = sbr.rel (0) target = $region9
  $region8: #{pool_and_align.1} parent=0 // pred_region
    _
  $region9: #{pool_and_align.1} parent=0 // pred_fallthru
    _
  // Predicated region
  $region10: #{pool_and_align.1} parent=0 // pred_check
    _
  $region11: #{pool_and_align.1} parent=0 // pred_check_branch
    %14 = sbr.rel (0) target = $region13
  $region12: #{pool_and_align.1} parent=0 // pred_region
    _
  $region13: #{pool_and_align.1} parent=0 // pred_fallthru
    _
  // Predicated region
  $region14: #{pool_and_align.1} parent=0 // pred_check
    _
  $region15: #{pool_and_align.1} parent=0 // pred_check_branch
    %16 = sbr.rel (0) target = $region17
  $region16: #{pool_and_align.1} parent=0 // pred_region
    _
  $region17: #{pool_and_align.1} parent=0 // pred_fallthru
    _
  %v17 = vld [vmem:[%s0] sm:$0xff]
  %v18 = vld [vmem:[%s0 + $0x8] sm:$0xff]
  %v19 = vld [vmem:[%s0 + $0x10] sm:$0x1]
  %v20 = vld [vmem:[%s0 + $0x18] sm:$0x1]
  %v21 = vld [vmem:[%s1] sm:$0xff]
  %v22 = vld [vmem:[%s1 + $0x8] sm:$0xff]
  %v23 = vld [vmem:[%s1 + $0x10] sm:$0xff]
  %v24 = vld [vmem:[%s1 + $0x18] sm:$0xff]
  %v25 = vld [vmem:[%s1 + $0x20] sm:$0xff]
  %v26 = vld [vmem:[%s1 + $0x28] sm:$0xff]
  %v27 = vld [vmem:[%s1 + $0x30] sm:$0xff]
  %v28 = vld [vmem:[%s1 + $0x38] sm:$0xff]
  %v29 = vld [vmem:[%s1 + $0x40] sm:$0xff]
  %v30 = vld [vmem:[%s1 + $0x48] sm:$0xff]
  %v31 = vld [vmem:[%s1 + $0x50] sm:$0xff]
  %v32 = vld [vmem:[%s1 + $0x58] sm:$0xff]
  %v33 = vld [vmem:[%s1 + $0x60] sm:$0xff]
  %v34 = vld [vmem:[%s1 + $0x68] sm:$0xff]
  %v35 = vld [vmem:[%s1 + $0x70] sm:$0xff]
  %v36 = vld [vmem:[%s1 + $0x78] sm:$0xff]
  %v37 = vld [vmem:[%s1 + $0x80] sm:$0xff]
  %v38 = vld [vmem:[%s1 + $0x88] sm:$0xff]
  %v39 = vld [vmem:[%s1 + $0x90] sm:$0xff]
  %v40 = vld [vmem:[%s1 + $0x98] sm:$0xff]
  %v41 = vld [vmem:[%s1 + $0xa0] sm:$0xff]
  %v42 = vld [vmem:[%s1 + $0xa8] sm:$0xff]
  %v43 = vld [vmem:[%s1 + $0xb0] sm:$0xff]
  %v44 = vld [vmem:[%s1 + $0xb8] sm:$0xff]
  %v45 = vld [vmem:[%s1 + $0xc0] sm:$0xff]
  %v46 = vld [vmem:[%s1 + $0xc8] sm:$0xff]
  %v47 = vld [vmem:[%s1 + $0xd0] sm:$0xff]
  %v48 = vld [vmem:[%s1 + $0xd8] sm:$0xff]
  %v49 = vld [vmem:[%s1 + $0xe0] sm:$0xff]
  %v50 = vld [vmem:[%s1 + $0xe8] sm:$0xff]
  %v51 = vld [vmem:[%s1 + $0xf0] sm:$0xff]
  %v52 = vld [vmem:[%s1 + $0xf8] sm:$0xff]
  %53 = vmatpush.msra.mxu0 %v36
  %54 = vmatpush.msra.mxu0 %v35
  %55 = vmatpush.msra.mxu0 %v34
  %56 = vmatpush.msra.mxu0 %v33
  %57 = vmatpush.msra.mxu0 %v32
  %58 = vmatpush.msra.mxu0 %v31
  %59 = vmatpush.msra.mxu0 %v30
  %60 = vmatpush.msra.mxu0 %v29
  %61 = vmatpush.msra.mxu0 %v28
  %62 = vmatpush.msra.mxu0 %v27
  %63 = vmatpush.msra.mxu0 %v26
  %64 = vmatpush.msra.mxu0 %v25
  %65 = vmatpush.msra.mxu0 %v24
  %66 = vmatpush.msra.mxu0 %v23
  %67 = vmatpush.msra.mxu0 %v22
  %68 = vmatpush.msra.mxu0 %v21
  %69 = vmatmul.f32.gmra.mxu0 %v17
  %v70 = vpop.f32.mrf.mxu0
  %v71 = vadd.f32 0.0, %v70
  %72 = vmatmul.f32.gmra.mxu0 %v19
  %v73 = vpop.f32.mrf.mxu0
  %v74 = vadd.f32 0.0, %v73
  %75 = vdwg.mxu0
  %76 = vmatpush.msra.mxu0 %v52
  %77 = vmatpush.msra.mxu0 %v51
  %78 = vmatpush.msra.mxu0 %v50
  %79 = vmatpush.msra.mxu0 %v49
  %80 = vmatpush.msra.mxu0 %v48
  %81 = vmatpush.msra.mxu0 %v47
  %82 = vmatpush.msra.mxu0 %v46
  %83 = vmatpush.msra.mxu0 %v45
  %84 = vmatpush.msra.mxu0 %v44
  %85 = vmatpush.msra.mxu0 %v43
  %86 = vmatpush.msra.mxu0 %v42
  %87 = vmatpush.msra.mxu0 %v41
  %88 = vmatpush.msra.mxu0 %v40
  %89 = vmatpush.msra.mxu0 %v39
  %90 = vmatpush.msra.mxu0 %v38
  %91 = vmatpush.msra.mxu0 %v37
  %92 = vmatmul.f32.gmra.mxu0 %v18
  %v93 = vpop.f32.mrf.mxu0
  %v94 = vadd.f32 %v71, %v93
  %95 = vmatmul.f32.gmra.mxu0 %v20
  %v96 = vpop.f32.mrf.mxu0
  %v97 = vadd.f32 %v74, %v96
  %98 = vdwg.mxu0
  %v99 = vld [vmem:[%s2] sm:$0xff]
  %v100 = vld [vmem:[%s2 + $0x8] sm:$0xff]
  %vm101 = vcmask 72704
  %v103 = vsel %vm101, %v99, 0
  %v106 = vsel %vm101, %v100, 0
  %vm108 = vcmask 1040384
  %v110 = vsel %vm108, %v97, 0
  %112 = vmatpush.msra.mxu0 0.0
  %113 = vmatpush.msra.mxu0 0.0
  %114 = vmatpush.msra.mxu0 0.0
  %115 = vmatpush.msra.mxu0 0.0
  %116 = vmatpush.msra.mxu0 0.0
  %117 = vmatpush.msra.mxu0 0.0
  %118 = vmatpush.msra.mxu0 0.0
  %119 = vmatpush.msra.mxu0 0.0
  %120 = vmatpush.msra.mxu0 0.0
  %121 = vmatpush.msra.mxu0 0.0
  %122 = vmatpush.msra.mxu0 0.0
  %123 = vmatpush.msra.mxu0 0.0
  %124 = vmatpush.msra.mxu0 0.0
  %125 = vmatpush.msra.mxu0 0.0
  %126 = vmatpush.msra.mxu0 %v110
  %127 = vmatpush.msra.mxu0 %v94
  %128 = vmatmul.f32.gmra.mxu0 %v103
  %v129 = vpop.f32.mrf.mxu0
  %v130 = vadd.f32 0.0, %v129
  %131 = vmatmul.f32.gmra.mxu0 %v106
  %v132 = vpop.f32.mrf.mxu0
  %v133 = vadd.f32 0.0, %v132
  %134 = vdwg.mxu0
  %v135 = vmax.f32 %v130, 0.0
  %v136 = vmax.f32 %v133, 0.0
  %v137 = vld [vmem:[%s3] sm:$0xff]
  %v138 = vld [vmem:[%s3 + $0x8] sm:$0xff]
  %v139 = vld [vmem:[%s3 + $0x10] sm:$0xff]
  %v140 = vld [vmem:[%s3 + $0x18] sm:$0xff]
  %vm141 = vcmask 130048
  %v143 = vsel %vm141, %v135, 0
  %v146 = vsel %vm141, %v136, 0
  %148 = vmatpush.msra.mxu0 0.0
  %149 = vmatpush.msra.mxu0 0.0
  %150 = vmatpush.msra.mxu0 0.0
  %151 = vmatpush.msra.mxu0 0.0
  %152 = vmatpush.msra.mxu0 0.0
  %153 = vmatpush.msra.mxu0 0.0
  %154 = vmatpush.msra.mxu0 0.0
  %155 = vmatpush.msra.mxu0 0.0
  %156 = vmatpush.msra.mxu0 0.0
  %157 = vmatpush.msra.mxu0 0.0
  %158 = vmatpush.msra.mxu0 0.0
  %159 = vmatpush.msra.mxu0 0.0
  %160 = vmatpush.msra.mxu0 0.0
  %161 = vmatpush.msra.mxu0 0.0
  %162 = vmatpush.msra.mxu0 %v139
  %163 = vmatpush.msra.mxu0 %v137
  %164 = vmatmul.f32.gmra.mxu0 %v143
  %v165 = vpop.f32.mrf.mxu0
  %v166 = vadd.f32 0.0, %v165
  %167 = vmatmul.f32.gmra.mxu0 %v146
  %v168 = vpop.f32.mrf.mxu0
  %v169 = vadd.f32 0.0, %v168
  %170 = vdwg.mxu0
  %171 = vmatpush.msra.mxu0 0.0
  %172 = vmatpush.msra.mxu0 0.0
  %173 = vmatpush.msra.mxu0 0.0
  %174 = vmatpush.msra.mxu0 0.0
  %175 = vmatpush.msra.mxu0 0.0
  %176 = vmatpush.msra.mxu0 0.0
  %177 = vmatpush.msra.mxu0 0.0
  %178 = vmatpush.msra.mxu0 0.0
  %179 = vmatpush.msra.mxu0 0.0
  %180 = vmatpush.msra.mxu0 0.0
  %181 = vmatpush.msra.mxu0 0.0
  %182 = vmatpush.msra.mxu0 0.0
  %183 = vmatpush.msra.mxu0 0.0
  %184 = vmatpush.msra.mxu0 0.0
  %185 = vmatpush.msra.mxu0 %v140
  %186 = vmatpush.msra.mxu0 %v138
  %187 = vmatmul.f32.gmra.mxu0 %v143
  %v188 = vpop.f32.mrf.mxu0
  %v189 = vadd.f32 0.0, %v188
  %190 = vmatmul.f32.gmra.mxu0 %v146
  %v191 = vpop.f32.mrf.mxu0
  %v192 = vadd.f32 0.0, %v191
  %193 = vdwg.mxu0
  %194 = vst [vmem:[%s4] sm:$0xff] %v166
  %195 = vst [vmem:[%s4 + $0x8] sm:$0xff] %v189
  %196 = vst [vmem:[%s4 + $0x10] sm:$0xff] %v169
  %197 = vst [vmem:[%s4 + $0x18] sm:$0xff] %v192
  // Predicated region
  $region18: #{pool_and_align.1} parent=0 // pred_check
    _
  $region19: #{pool_and_align.1} parent=0 // pred_check_branch
    %199 = sbr.rel (0) target = $region21
  $region20: #{pool_and_align.1} parent=0 // pred_region
    _
  $region21: #{pool_and_align.1} parent=0 // pred_fallthru
    _
  // Predicated region
  $region22: #{pool_and_align.1} parent=0 // pred_check
    _
  $region23: #{pool_and_align.1} parent=0 // pred_check_branch
    %201 = sbr.rel (0) target = $region25
  $region24: #{pool_and_align.1} parent=0 // pred_region
    _
  $region25: #{pool_and_align.1} parent=0 // pred_fallthru
    _

</llo_original>
